<compile_context>
chip_gen: v5e
topology: v5e:2x2
jax: 0.10.0
libtpu: 0.0.40
codegen_flags: <defaults>
</compile_context>

<pallas_src>
import functools
import math

import jax
import jax.numpy as jnp
from jax.experimental import pallas as pl
from jax.experimental.pallas import tpu as pltpu


# Conservative, generation-safe budgets: 32 MiB scoped VMEM limit works on
# v7x (64 MiB physical per TC) as well as v5e/v6e (128 MiB); the pipelined
# working set (x + out tiles, double buffered) is kept under ~24 MiB.
_VMEM_LIMIT_BYTES = 32 * 1024 * 1024
_WORKING_SET_BYTES = 24 * 1024 * 1024


def _build_pe_table(d_model: int, max_len: int = 64) -> jnp.ndarray:
    """Replicates the PyTorch buffer `pe` of shape (max_len, 1, d_model)."""
    position = jnp.arange(0, max_len, dtype=jnp.float32)[:, None]            # (max_len, 1)
    div_term = jnp.exp(
        jnp.arange(0, d_model, 2, dtype=jnp.float32) * (-math.log(10000.0) / d_model)
    )                                                                        # (ceil(d/2),)
    angles = position * div_term                                             # (max_len, ceil(d/2))
    pe = jnp.zeros((max_len, d_model), dtype=jnp.float32)
    pe = pe.at[:, 0::2].set(jnp.sin(angles))
    pe = pe.at[:, 1::2].set(jnp.cos(angles)[:, : d_model // 2])              # odd-d_model safe
    return pe[:, None, :]                                                    # (max_len, 1, d_model)


def _sublane_packing(dtype) -> int:
    """Rows per sublane tile: 8 for 4-byte dtypes, 16 for 2-byte, 32 for 1-byte."""
    itemsize = jnp.dtype(dtype).itemsize
    return max(8 * (4 // max(itemsize, 1)), 8)


def _choose_seq_tile(seq_len: int, row_bytes: int, packing: int, min_tiles: int = 2) -> int:
    """Largest packing-multiple seq tile fitting the double-buffered budget.

    Capped at cdiv(seq_len, min_tiles) (when seq_len is long enough) so the
    "parallel" seq axis has work for both v7x TensorCores.
    """
    per_tile = max(_WORKING_SET_BYTES // 4, 1)        # 2 streamed arrays x 2 buffers
    rows = max(per_tile // max(row_bytes, 1), 1)
    if seq_len >= min_tiles * packing:
        rows = min(rows, pl.cdiv(seq_len, min_tiles))
    if rows >= seq_len:
        return seq_len                                 # single full-extent block (always legal)
    return max((rows // packing) * packing, packing)


def _pe_add_slab_kernel(x_ref, pe_ref, o_ref, *, reps: int):
    """x_ref/o_ref: (tile_rows, batch*d_model); pe_ref: (tile_rows, d_model)."""
    pe_blk = pe_ref[...]
    if reps > 1:
        pe_blk = jnp.tile(pe_blk, (1, reps))           # broadcast PE across batch in-register
    o_ref[...] = (x_ref[...] + pe_blk).astype(o_ref.dtype)


def _pe_add_3d_kernel(x_ref, pe_ref, o_ref):
    """x_ref/o_ref: (tS, tB, tD); pe_ref: (tS, 1, tD) broadcast over batch."""
    o_ref[...] = (x_ref[...] + pe_ref[...]).astype(o_ref.dtype)


def positional_encoding_forward(x: jnp.ndarray, pe: jnp.ndarray, *, donate_x: bool = False):
    """x: (seq_len, batch, d_model); pe: (max_len, 1, d_model) buffer."""
    seq_len, batch, d_model = x.shape
    max_len = pe.shape[0]
    if seq_len > max_len:
        raise ValueError(f"seq_len={seq_len} exceeds positional-encoding max_len={max_len}")

    dtype = x.dtype
    itemsize = jnp.dtype(dtype).itemsize
    packing = _sublane_packing(dtype)
    row_width = batch * d_model
    row_bytes = row_width * itemsize
    per_tile_budget = _WORKING_SET_BYTES // 4

    # Small (seq_len, d_model) PE table, cast to the activation dtype (see NOTE above).
    pe_sd = pe[:seq_len, 0, :].astype(dtype)
    io_alias = {0: 0} if donate_x else {}
    compiler_params = pltpu.CompilerParams(
        dimension_semantics=None,                      # set per path below
        vmem_limit_bytes=_VMEM_LIMIT_BYTES,
    )

    if packing * row_bytes <= per_tile_budget:
        # ---- main path: lane-dense 2-D slab (S, B*D), seq-only "parallel" tiling ----
        x_2d = x.reshape(seq_len, row_width)           # (B, D) contiguous -> cheap view under jit
        tile_rows = _choose_seq_tile(seq_len, row_bytes, packing)
        grid = (pl.cdiv(seq_len, tile_rows),)

        out_2d = pl.pallas_call(
            functools.partial(_pe_add_slab_kernel, reps=batch),
            out_shape=jax.ShapeDtypeStruct((seq_len, row_width), dtype),
            grid=grid,
            in_specs=[
                pl.BlockSpec((tile_rows, row_width), lambda i: (i, 0)),
                pl.BlockSpec((tile_rows, d_model), lambda i: (i, 0)),
            ],
            out_specs=pl.BlockSpec((tile_rows, row_width), lambda i: (i, 0)),
            input_output_aliases=io_alias,
            compiler_params=pltpu.CompilerParams(
                dimension_semantics=("parallel",),
                vmem_limit_bytes=_VMEM_LIMIT_BYTES,
            ),
        )(x_2d, pe_sd)
        return out_2d.reshape(seq_len, batch, d_model)

    # ---- fallback: B*D too wide for a single-row-block budget -> 3-D tiling ----
    elems_per_tile = max(per_tile_budget // itemsize, 1)
    tile_rows = seq_len if seq_len <= packing else packing
    # Batch tile: multiple of 8, or the full batch.
    tile_b = max(min(elems_per_tile // max(tile_rows * d_model, 1), batch), 1)
    if tile_b < batch:
        tile_b = max((tile_b // 8) * 8, min(8, batch))
    if tile_b >= batch:
        tile_b = batch
    # d_model tile: multiple of 128, or the full d_model, if still over budget.
    tile_d = d_model
    if tile_rows * tile_b * tile_d > elems_per_tile and d_model > 128:
        tile_d = max((elems_per_tile // max(tile_rows * tile_b, 1)) // 128 * 128, 128)
        tile_d = min(tile_d, d_model)

    grid = (pl.cdiv(seq_len, tile_rows), pl.cdiv(batch, tile_b), pl.cdiv(d_model, tile_d))
    return pl.pallas_call(
        _pe_add_3d_kernel,
        out_shape=jax.ShapeDtypeStruct((seq_len, batch, d_model), dtype),
        grid=grid,
        in_specs=[
            pl.BlockSpec((tile_rows, tile_b, tile_d), lambda i, j, k: (i, j, k)),
            pl.BlockSpec((tile_rows, 1, tile_d), lambda i, j, k: (i, 0, k)),
        ],
        out_specs=pl.BlockSpec((tile_rows, tile_b, tile_d), lambda i, j, k: (i, j, k)),
        input_output_aliases=io_alias,
        compiler_params=pltpu.CompilerParams(
            dimension_semantics=("parallel", "parallel", "parallel"),
            vmem_limit_bytes=_VMEM_LIMIT_BYTES,
        ),
    )(x, pe_sd[:, None, :])


if __name__ == "__main__":
    d_model = 32
    max_len = 64
    pe = _build_pe_table(d_model, max_len)

    fwd = jax.jit(positional_encoding_forward)

    # Small shape implied by the module: seq=8, batch=2, d_model=32.
    x = jax.random.normal(jax.random.PRNGKey(0), (8, 2, d_model), dtype=jnp.float32)
    out = jax.block_until_ready(fwd(x, pe))
    ref = x + pe[:8]
    assert out.shape == x.shape and out.dtype == x.dtype
    assert jnp.allclose(out, ref, atol=1e-6), "mismatch vs reference (seq=8)"

    # Multi-tile seq path: exercises >=2 "parallel" seq tiles (v7x 2-TC split).
    x2 = jax.random.normal(jax.random.PRNGKey(1), (64, 2, d_model), dtype=jnp.float32)
    out2 = jax.block_until_ready(fwd(x2, pe))
    ref2 = x2 + pe[:64]
    assert jnp.allclose(out2, ref2, atol=1e-6), "mismatch vs reference (seq=64)"

    print("KERNEL_OK")
</pallas_src>

<mosaic_0001>
module attributes {stable_mosaic.version = 11 : i64} {
  func.func @_pe_add_slab_kernel(%arg0: i32, %arg1: memref<8x64xf32, #tpu.memory_space<vmem>>, %arg2: memref<8x32xf32, #tpu.memory_space<vmem>>, %arg3: memref<8x64xf32, #tpu.memory_space<vmem>>) attributes {dimension_semantics = [#tpu.dimension_semantics<parallel>], iteration_bounds = array<i64: 1>, scalar_prefetch = 0 : i64, scratch_operands = 0 : i64, tpu.core_type = #tpu.core_type<tc>, window_params = [{transform_indices = @transform_0, window_bounds = array<i64: 8, 64>}, {transform_indices = @transform_1, window_bounds = array<i64: 8, 32>}, {transform_indices = @transform_2, window_bounds = array<i64: 8, 64>}]} {
    %c0 = arith.constant 0 : index
    %c0_0 = arith.constant 0 : index
    %0 = vector.load %arg2[%c0, %c0_0] : memref<8x32xf32, #tpu.memory_space<vmem>>, vector<8x32xf32>
    %1 = tpu.concatenate %0, %0 in 1 : vector<8x32xf32>, vector<8x32xf32> -> vector<8x64xf32>
    %c0_1 = arith.constant 0 : index
    %c0_2 = arith.constant 0 : index
    %2 = vector.load %arg1[%c0_1, %c0_2] : memref<8x64xf32, #tpu.memory_space<vmem>>, vector<8x64xf32>
    %3 = arith.addf %2, %1 : vector<8x64xf32>
    %c0_3 = arith.constant 0 : index
    %c0_4 = arith.constant 0 : index
    %4 = vector.load %arg3[%c0_3, %c0_4] : memref<8x64xf32, #tpu.memory_space<vmem>>, vector<8x64xf32>
    tpu.vector_store %arg3[%c0_3, %c0_4], %3 {strides = array<i32>} : memref<8x64xf32, #tpu.memory_space<vmem>>, vector<8x64xf32>,
    return
  }
  func.func @transform_0(%arg0: i32) -> (i32, i32) {
    %c0_i32 = arith.constant 0 : i32
    %c0_i32_0 = arith.constant 0 : i32
    return %arg0, %c0_i32 : i32, i32
  }
  func.func @transform_1(%arg0: i32) -> (i32, i32) {
    %c0_i32 = arith.constant 0 : i32
    %c0_i32_0 = arith.constant 0 : i32
    return %arg0, %c0_i32 : i32, i32
  }
  func.func @transform_2(%arg0: i32) -> (i32, i32) {
    %c0_i32 = arith.constant 0 : i32
    %c0_i32_0 = arith.constant 0 : i32
    return %arg0, %c0_i32 : i32, i32
  }
}

</mosaic_0001>

<llo_original>
// kernel: positional_encoding_forward.1
$region0: #{positional_encoding_forward.1}
  #allocation0 [shape = 'u32[]', space=smem, size = 0x4, offset = 0x4, fixed_abs, tag = 'smem constant byte address 0x4 - core index']
  #allocation1 [shape = 'u32[72,128]{1,0:T(1,128)}', space=vmem, size = 0x9000, scoped, tag = 'internal scratch']
  %s0 = inlined_call_operand.vmem [shape: f32[8,64], index: 0, kind: input, shape index: {}]
  %s1 = inlined_call_operand.vmem [shape: f32[8,32], index: 1, kind: input, shape index: {}]
  %s2 = inlined_call_operand.vmem [shape: f32[8,64], index: 2, kind: output, shape index: {}]
  %s3 = sld [smem:[#allocation0]]
  $region18: #{positional_encoding_forward.1} parent=0
    _
  %s5 = ssub.s32 1, %s3
  %s6 = scalar_select 0, %s5, %s3
  // Predicated region
  $region2: #{positional_encoding_forward.1} parent=0 // pred_check
    _
  $region3: #{positional_encoding_forward.1} parent=0 // pred_check_branch
    %8 = sbr.rel (0) target = $region5
  $region4: #{positional_encoding_forward.1} parent=0 // pred_region
    _
  $region5: #{positional_encoding_forward.1} parent=0 // pred_fallthru
    _
  // Predicated region
  $region6: #{positional_encoding_forward.1} parent=0 // pred_check
    _
  $region7: #{positional_encoding_forward.1} parent=0 // pred_check_branch
    %10 = sbr.rel (0) target = $region9
  $region8: #{positional_encoding_forward.1} parent=0 // pred_region
    _
  $region9: #{positional_encoding_forward.1} parent=0 // pred_fallthru
    _
  %v11 = vld [vmem:[%s1] sm:$0xff]
  %13 = vrot.lane.b32.xlu0 %v11, 32
  %v14 = vpop.permute.xlu0 %13
  %vm16 = vcmask 261120
  %v17 = vsel %vm16, %v11, %v14
  %v18 = vld [vmem:[%s0] sm:$0xff]
  %v19 = vadd.f32 %v18, %v17
  %vm20 = vcmask 523264
  %21 = vst.msk [vmem:[%s2] sm:$0xff] %vm20, %v19
  // Predicated region
  $region10: #{positional_encoding_forward.1} parent=0 // pred_check
    _
  $region11: #{positional_encoding_forward.1} parent=0 // pred_check_branch
    %23 = sbr.rel (0) target = $region13
  $region12: #{positional_encoding_forward.1} parent=0 // pred_region
    _
  $region13: #{positional_encoding_forward.1} parent=0 // pred_fallthru
    _
  // Predicated region
  $region14: #{positional_encoding_forward.1} parent=0 // pred_check
    _
  $region15: #{positional_encoding_forward.1} parent=0 // pred_check_branch
    %25 = sbr.rel (0) target = $region17
  $region16: #{positional_encoding_forward.1} parent=0 // pred_region
    _
  $region17: #{positional_encoding_forward.1} parent=0 // pred_fallthru
    _

</llo_original>
